<compile_context>
chip_gen: v6e
topology: v6e:2x2x1
jax: 0.10.0
libtpu: 0.0.40
codegen_flags: <defaults>
</compile_context>

<pallas_src>
import jax
import jax.numpy as jnp
from jax.experimental import pallas as pl
from jax.experimental.pallas import tpu as pltpu

HIDDEN_SIZE = 20


def _attn_sum_kernel(e_ref, o_ref):
    # e_ref: (B, S, H) in VMEM;  o_ref: (B, H) in VMEM.
    # Softmax over the size-1 axis makes every attention weight exactly 1.0,
    # so applied = sum over S of encoder_outputs: one reduction over axis 1.
    e = e_ref[...].astype(jnp.float32)                    # (B, S, H)
    o_ref[...] = jnp.sum(e, axis=1).astype(o_ref.dtype)   # (B, H)


def attention_forward(hidden, encoder_outputs):
    """hidden: (B, H) f32, encoder_outputs: (B, S, H) f32 -> (B, 1, H) f32.

    `hidden` only participates in the mathematically-discarded score
    computation, so it is not passed into the kernel (no DMA for it).
    """
    B, H = hidden.shape
    Bs, S, He = encoder_outputs.shape
    assert B == Bs and H == He

    # Tiny problem: keep the whole array resident in VMEM, no grid.
    # At realistic sizes one would add a "parallel" grid over B and an
    # "arbitrary" blocked reduction over S with a VMEM accumulator.
    out2d = pl.pallas_call(
        _attn_sum_kernel,
        out_shape=jax.ShapeDtypeStruct((B, H), jnp.float32),
        in_specs=[pl.BlockSpec(memory_space=pltpu.MemorySpace.VMEM)],
        out_specs=pl.BlockSpec(memory_space=pltpu.MemorySpace.VMEM),
    )(encoder_outputs)

    # Restore the (B, 1, H) shape of the PyTorch module outside the kernel.
    return out2d[:, None, :]


def _reference(hidden, encoder_outputs):
    # Faithful JAX transcription of the (degenerate) PyTorch forward.
    scores = jnp.einsum("bh,bsh->bs", hidden, encoder_outputs)[:, None, :]  # (B,1,S)
    weights = jax.nn.softmax(scores, axis=1)                                # dim=1 -> ones
    applied = jnp.einsum("bos,bsh->boh", weights, encoder_outputs)          # (B,1,H)
    return applied


if __name__ == "__main__":
    B, S, H = 2, 8, HIDDEN_SIZE

    key = jax.random.PRNGKey(0)
    k_h, k_e = jax.random.split(key, 2)

    hidden = jax.random.normal(k_h, (B, H), dtype=jnp.float32)
    encoder_outputs = jax.random.normal(k_e, (B, S, H), dtype=jnp.float32)

    out = attention_forward(hidden, encoder_outputs)
    out = jax.block_until_ready(out)

    ref = _reference(hidden, encoder_outputs)
    assert out.shape == (B, 1, H), out.shape
    assert jnp.allclose(out, ref, atol=1e-5, rtol=1e-5), "mismatch vs reference"

    print("KERNEL_OK")
</pallas_src>

<mosaic_0001>
module attributes {stable_mosaic.version = 11 : i64} {
  func.func @_attn_sum_kernel(%arg0: memref<2x8x20xf32, #tpu.memory_space<vmem>>, %arg1: memref<2x20xf32, #tpu.memory_space<vmem>>) attributes {dimension_semantics = [], scalar_prefetch = 0 : i64, scratch_operands = 0 : i64, tpu.core_type = #tpu.core_type<tc>} {
    %c0 = arith.constant 0 : index
    %c0_0 = arith.constant 0 : index
    %c0_1 = arith.constant 0 : index
    %0 = vector.load %arg0[%c0, %c0_0, %c0_1] : memref<2x8x20xf32, #tpu.memory_space<vmem>>, vector<2x8x20xf32>
    %cst = arith.constant dense<0.000000e+00> : vector<2x20xf32>
    %1 = vector.multi_reduction <add>, %0, %cst [1] : vector<2x8x20xf32> to vector<2x20xf32>
    %c0_2 = arith.constant 0 : index
    %c0_3 = arith.constant 0 : index
    %2 = vector.load %arg1[%c0_2, %c0_3] : memref<2x20xf32, #tpu.memory_space<vmem>>, vector<2x20xf32>
    tpu.vector_store %arg1[%c0_2, %c0_3], %1 {strides = array<i32>} : memref<2x20xf32, #tpu.memory_space<vmem>>, vector<2x20xf32>,
    return
  }
}

</mosaic_0001>

<llo_original>
// kernel: tpu_custom_call.1
$region0: #{tpu_custom_call.1}
  #allocation0 [shape = 'u32[]', space=smem, size = 0x4, offset = 0x4, fixed_abs, tag = 'smem constant byte address 0x4 - core index']
  #allocation1 [shape = 'u32[144,128]{1,0:T(1,128)}', space=vmem, size = 0x12000, scoped, tag = 'internal scratch']
  %s0 = inlined_call_operand.hbm [shape: f32[2,8,20], index: 0, kind: input, shape index: {}]
  %s1 = inlined_call_operand.hbm [shape: f32[2,20], index: 1, kind: output, shape index: {}]
  %s2 = sld [smem:[#allocation0]]
  $region18: #{tpu_custom_call.1} parent=0
    _
  %s4 = ssub.s32 1, %s2
  %s5 = scalar_select 0, %s4, %s2
  $region1: #{tpu_custom_call.1} parent=0
    #allocation2 [shape = 'u8[8192]{0}', space=vmem, size = 0x2000, scoped, tag = 'input window, operand 0, single buffered']
    #allocation3 [shape = 's32[1]{0}', space=sflag, size = 0x4, scoped, tag = 'scoped memory for tpu_custom_call.1']
    #allocation4 [shape = 's32[1]{0}', space=sflag, size = 0x4, scoped, tag = 'scoped memory for tpu_custom_call.1']
    #allocation5 [shape = 'u8[1024]{0}', space=vmem, size = 0x400, scoped, tag = 'output window, operand 0, single buffered']
    %6 = vsyncpa [#allocation3], 0
    %7 = vsyncpa [#allocation4], 0
    // Predicated region
    $region2: #{tpu_custom_call.1} parent=1 // pred_check
      _
    $region3: #{tpu_custom_call.1} parent=1 // pred_check_branch
      %9 = sbr.rel (0) target = $region5
    $region4: #{tpu_custom_call.1} parent=1 // pred_region
      %s11 = ssub.s32 256, 256
      %12 = vsyncadd [#allocation3], %s11
      %s13 = sshll.u32 [#allocation2], 4
      %s14 = int_to_ptr.vmem [resolvable:$true] %s13
      %19 = dma.hbm_to_vmem [thread:$0]  %s0, 256, %s14, [#allocation3], 128, 128, 8
    $region5: #{tpu_custom_call.1} parent=1 // pred_fallthru
      _
    // Predicated region
    $region6: #{tpu_custom_call.1} parent=1 // pred_check
      _
    $region7: #{tpu_custom_call.1} parent=1 // pred_check_branch
      %21 = sbr.rel (0) target = $region9
    $region8: #{tpu_custom_call.1} parent=1 // pred_region
      %22 = dma.done [#allocation3], 256
    $region9: #{tpu_custom_call.1} parent=1 // pred_fallthru
      _
    %v23 = vld [vmem:[#allocation2] sm:$0xff]
    %v24 = vld [vmem:[#allocation2 + $0x8] sm:$0xff]
    %vm25 = vcmask 162816
    %v26 = vsel %vm25, %v23, 0.0
    %v27 = vrot.slane %v26, 4
    %v28 = vadd.f32 %v26, %v27
    %v29 = vrot.slane %v28, 2
    %v30 = vadd.f32 %v28, %v29
    %v31 = vrot.slane %v30, 1
    %v32 = vadd.f32 %v30, %v31
    %v33 = vsel %vm25, %v24, 0.0
    %v34 = vrot.slane %v33, 4
    %v35 = vadd.f32 %v33, %v34
    %v36 = vrot.slane %v35, 2
    %v37 = vadd.f32 %v35, %v36
    %v38 = vrot.slane %v37, 1
    %v39 = vadd.f32 %v37, %v38
    %vm42 = vcmask 1041409
    %v43 = vsel %vm42, %v39, %v32
    %vm45 = vcmask 156672
    %46 = vst.msk [vmem:[#allocation5] sm:$0x3] %vm45, %v43
    // Predicated region
    $region10: #{tpu_custom_call.1} parent=1 // pred_check
      _
    $region11: #{tpu_custom_call.1} parent=1 // pred_check_branch
      %48 = sbr.rel (0) target = $region13
    $region12: #{tpu_custom_call.1} parent=1 // pred_region
      %s50 = ssub.s32 32, 32
      %51 = vsyncadd [#allocation4], %s50
      %s53 = sshll.u32 [#allocation5], 4
      %s54 = int_to_ptr.vmem [resolvable:$true] %s53
      %56 = dma.vmem_to_hbm [thread:$0]  %s54, 32, %s1, [#allocation4]
    $region13: #{tpu_custom_call.1} parent=1 // pred_fallthru
      _
    // Predicated region
    $region14: #{tpu_custom_call.1} parent=1 // pred_check
      _
    $region15: #{tpu_custom_call.1} parent=1 // pred_check_branch
      %58 = sbr.rel (0) target = $region17
    $region16: #{tpu_custom_call.1} parent=1 // pred_region
      %59 = dma.done [#allocation4], 32
    $region17: #{tpu_custom_call.1} parent=1 // pred_fallthru
      _
    %60 = vsyncpa [#allocation3], 1
    %61 = vsyncpa [#allocation4], 1

</llo_original>
